<compile_context>
chip_gen: v5e
topology: v5e:2x2
jax: 0.10.0
libtpu: 0.0.40
codegen_flags: <defaults>
</compile_context>

<pallas_src>
import functools

import jax
import jax.numpy as jnp
from jax.experimental import pallas as pl
from jax.experimental.pallas import tpu as pltpu


# Default tile sizes (small so the toy config below exercises multi-step grids;
# raise toward 256-512 for production GPT sizes / bigger VMEM budgets).
TM, TN, TK = 128, 256, 256          # generic matmul tiles
TQ, TKV = 64, 64                    # attention q / kv tiles
TM_HEAD, TV_HEAD = 128, 256         # LM-head tiles (tokens x vocab)

LN_EPS = 1e-5


def _fit(dim, target):
    """Largest tile <= target that evenly divides dim, else the full dim."""
    t = min(target, dim)
    return t if dim % t == 0 else dim


# ----------------------------------------------------------------------------
# Fused LayerNorm -> matmul (+bias, +optional GELU)
# ----------------------------------------------------------------------------

def _ln_matmul_kernel(x_ref, g_ref, bln_ref, w_ref, b_ref, o_ref, *, activation):
    x = x_ref[...].astype(jnp.float32)
    mu = jnp.mean(x, axis=-1, keepdims=True)
    var = jnp.mean(jnp.square(x - mu), axis=-1, keepdims=True)
    xn = (x - mu) * jax.lax.rsqrt(var + LN_EPS)
    xn = xn * g_ref[...].astype(jnp.float32) + bln_ref[...].astype(jnp.float32)
    y = jnp.dot(xn.astype(jnp.bfloat16), w_ref[...],
                preferred_element_type=jnp.float32)
    y = y + b_ref[...].astype(jnp.float32)
    if activation == "gelu":
        # tanh-approx GELU (GPT-2 "gelu_new").
        # TODO(synk): switch to exact erf GELU if the reference MCPT config uses nn.GELU default.
        y = 0.5 * y * (1.0 + jnp.tanh(0.7978845608028654 * (y + 0.044715 * y * y * y)))
    o_ref[...] = y.astype(o_ref.dtype)


def ln_matmul_bias(x, gamma, beta, w, b, activation=None, out_dtype=jnp.bfloat16):
    M, D = x.shape
    N = w.shape[1]
    tm, tn = _fit(M, TM), _fit(N, TN)
    return pl.pallas_call(
        functools.partial(_ln_matmul_kernel, activation=activation),
        out_shape=jax.ShapeDtypeStruct((M, N), out_dtype),
        grid=(M // tm, N // tn),
        in_specs=[
            pl.BlockSpec((tm, D), lambda i, j: (i, 0)),
            pl.BlockSpec((1, D), lambda i, j: (0, 0)),
            pl.BlockSpec((1, D), lambda i, j: (0, 0)),
            pl.BlockSpec((D, tn), lambda i, j: (0, j)),
            pl.BlockSpec((1, tn), lambda i, j: (0, j)),
        ],
        out_specs=pl.BlockSpec((tm, tn), lambda i, j: (i, j)),
        compiler_params=pltpu.CompilerParams(
            dimension_semantics=("parallel", "parallel")),
    )(x, gamma.reshape(1, D), beta.reshape(1, D), w, b.reshape(1, N))


# ----------------------------------------------------------------------------
# K-tiled matmul with f32 accumulator, fused bias + residual add
# ----------------------------------------------------------------------------

def _matmul_res_kernel(x_ref, w_ref, b_ref, r_ref, o_ref, acc_ref):
    k = pl.program_id(2)

    @pl.when(k == 0)
    def _():
        acc_ref[...] = jnp.zeros_like(acc_ref)

    acc_ref[...] += jnp.dot(x_ref[...], w_ref[...],
                            preferred_element_type=jnp.float32)

    @pl.when(k == pl.num_programs(2) - 1)
    def _():
        y = acc_ref[...] + b_ref[...].astype(jnp.float32) + r_ref[...].astype(jnp.float32)
        o_ref[...] = y.astype(o_ref.dtype)


def matmul_bias_residual(x, w, b, residual, out_dtype=jnp.bfloat16):
    M, K = x.shape
    N = w.shape[1]
    tm, tn, tk = _fit(M, TM), _fit(N, TN), _fit(K, TK)
    return pl.pallas_call(
        _matmul_res_kernel,
        out_shape=jax.ShapeDtypeStruct((M, N), out_dtype),
        grid=(M // tm, N // tn, K // tk),
        in_specs=[
            pl.BlockSpec((tm, tk), lambda i, j, k: (i, k)),
            pl.BlockSpec((tk, tn), lambda i, j, k: (k, j)),
            pl.BlockSpec((1, tn), lambda i, j, k: (0, j)),
            pl.BlockSpec((tm, tn), lambda i, j, k: (i, j)),
        ],
        out_specs=pl.BlockSpec((tm, tn), lambda i, j, k: (i, j)),
        scratch_shapes=[pltpu.VMEM((tm, tn), jnp.float32)],
        compiler_params=pltpu.CompilerParams(
            dimension_semantics=("parallel", "parallel", "arbitrary")),
    )(x, w, b.reshape(1, N), residual)


# ----------------------------------------------------------------------------
# Flash-style causal self-attention (online softmax, causal tile skipping)
# ----------------------------------------------------------------------------

def _flash_attn_kernel(q_ref, k_ref, v_ref, o_ref, m_sc, l_sc, acc_sc,
                       *, scale, tq, tkv):
    qi = pl.program_id(1)
    kv = pl.program_id(2)

    @pl.when(kv == 0)
    def _():
        m_sc[...] = jnp.full(m_sc.shape, -jnp.inf, jnp.float32)
        l_sc[...] = jnp.zeros(l_sc.shape, jnp.float32)
        acc_sc[...] = jnp.zeros(acc_sc.shape, jnp.float32)

    # Skip kv tiles that lie entirely above the causal diagonal.
    @pl.when(kv * tkv <= qi * tq + (tq - 1))
    def _():
        q = q_ref[0]                                    # (tq, Dh) bf16
        k = k_ref[0]                                    # (tkv, Dh) bf16
        s = jax.lax.dot_general(q, k, (((1,), (1,)), ((), ())),
                                preferred_element_type=jnp.float32) * scale
        row = qi * tq + jax.lax.broadcasted_iota(jnp.int32, (tq, tkv), 0)
        col = kv * tkv + jax.lax.broadcasted_iota(jnp.int32, (tq, tkv), 1)
        s = jnp.where(col <= row, s, jnp.float32(-1e30))

        m_prev = m_sc[...]
        m_new = jnp.maximum(m_prev, s.max(axis=-1, keepdims=True))
        alpha = jnp.exp(m_prev - m_new)
        p = jnp.exp(s - m_new)
        l_sc[...] = alpha * l_sc[...] + p.sum(axis=-1, keepdims=True)
        acc_sc[...] = alpha * acc_sc[...] + jax.lax.dot_general(
            p.astype(jnp.bfloat16), v_ref[0], (((1,), (0,)), ((), ())),
            preferred_element_type=jnp.float32)
        m_sc[...] = m_new

    @pl.when(kv == pl.num_programs(2) - 1)
    def _():
        out = acc_sc[...] * pl.reciprocal(l_sc[...], approx=True)
        o_ref[0] = out.astype(o_ref.dtype)


def flash_attention(q, k, v):
    # q, k, v: (B*H, S, Dh) bf16
    BH, S, Dh = q.shape
    scale = 1.0 / float(Dh) ** 0.5
    tq, tkv = _fit(S, TQ), _fit(S, TKV)
    q_spec = pl.BlockSpec((1, tq, Dh), lambda bh, qi, kv: (bh, qi, 0))
    kv_spec = pl.BlockSpec((1, tkv, Dh), lambda bh, qi, kv: (bh, kv, 0))
    return pl.pallas_call(
        functools.partial(_flash_attn_kernel, scale=scale, tq=tq, tkv=tkv),
        out_shape=jax.ShapeDtypeStruct((BH, S, Dh), q.dtype),
        grid=(BH, S // tq, S // tkv),
        in_specs=[q_spec, kv_spec, kv_spec],
        out_specs=pl.BlockSpec((1, tq, Dh), lambda bh, qi, kv: (bh, qi, 0)),
        scratch_shapes=[
            pltpu.VMEM((tq, 1), jnp.float32),
            pltpu.VMEM((tq, 1), jnp.float32),
            pltpu.VMEM((tq, Dh), jnp.float32),
        ],
        compiler_params=pltpu.CompilerParams(
            dimension_semantics=("parallel", "parallel", "arbitrary")),
    )(q, k, v)


# ----------------------------------------------------------------------------
# Fused final LayerNorm -> tied LM head (logits = LN(h) @ wte.T), vocab-tiled
# ----------------------------------------------------------------------------

def _lnf_lm_head_kernel(h_ref, g_ref, b_ref, wte_ref, o_ref):
    h = h_ref[...].astype(jnp.float32)
    mu = jnp.mean(h, axis=-1, keepdims=True)
    var = jnp.mean(jnp.square(h - mu), axis=-1, keepdims=True)
    hn = (h - mu) * jax.lax.rsqrt(var + LN_EPS)
    hn = hn * g_ref[...].astype(jnp.float32) + b_ref[...].astype(jnp.float32)
    # Contract hidden dims directly (no .T on the (tn, D) weight tile).
    o_ref[...] = jax.lax.dot_general(
        hn.astype(jnp.bfloat16), wte_ref[...],
        (((1,), (1,)), ((), ())),
        preferred_element_type=jnp.float32).astype(o_ref.dtype)


def lnf_lm_head(h, gamma, beta, wte_bf16):
    M, D = h.shape
    V = wte_bf16.shape[0]
    tm, tv = _fit(M, TM_HEAD), _fit(V, TV_HEAD)
    return pl.pallas_call(
        _lnf_lm_head_kernel,
        out_shape=jax.ShapeDtypeStruct((M, V), jnp.float32),
        grid=(M // tm, V // tv),
        in_specs=[
            pl.BlockSpec((tm, D), lambda i, j: (i, 0)),
            pl.BlockSpec((1, D), lambda i, j: (0, 0)),
            pl.BlockSpec((1, D), lambda i, j: (0, 0)),
            pl.BlockSpec((tv, D), lambda i, j: (j, 0)),
        ],
        out_specs=pl.BlockSpec((tm, tv), lambda i, j: (i, j)),
        compiler_params=pltpu.CompilerParams(
            dimension_semantics=("parallel", "parallel")),
    )(h, gamma.reshape(1, D), beta.reshape(1, D), wte_bf16)


# ----------------------------------------------------------------------------
# Model (MCPT / GPT-2 style transformer + tied LM head)
# ----------------------------------------------------------------------------

def init_params(key, *, vocab, n_positions, n_embd, n_head, n_layer):
    keys = jax.random.split(key, 2 + 6 * n_layer)
    std = 0.02
    params = {
        "wte": std * jax.random.normal(keys[0], (vocab, n_embd), jnp.float32),
        "wpe": std * jax.random.normal(keys[1], (n_positions, n_embd), jnp.float32),
        "lnf_g": jnp.ones((n_embd,), jnp.float32),
        "lnf_b": jnp.zeros((n_embd,), jnp.float32),
        "blocks": [],
    }
    for l in range(n_layer):
        k = keys[2 + 6 * l: 2 + 6 * (l + 1)]
        params["blocks"].append({
            "ln1_g": jnp.ones((n_embd,), jnp.float32),
            "ln1_b": jnp.zeros((n_embd,), jnp.float32),
            "attn_w": std * jax.random.normal(k[0], (n_embd, 3 * n_embd), jnp.float32),
            "attn_b": jnp.zeros((3 * n_embd,), jnp.float32),
            "proj_w": std * jax.random.normal(k[1], (n_embd, n_embd), jnp.float32),
            "proj_b": jnp.zeros((n_embd,), jnp.float32),
            "ln2_g": jnp.ones((n_embd,), jnp.float32),
            "ln2_b": jnp.zeros((n_embd,), jnp.float32),
            "fc_w": std * jax.random.normal(k[2], (n_embd, 4 * n_embd), jnp.float32),
            "fc_b": jnp.zeros((4 * n_embd,), jnp.float32),
            "mlp_proj_w": std * jax.random.normal(k[3], (4 * n_embd, n_embd), jnp.float32),
            "mlp_proj_b": jnp.zeros((n_embd,), jnp.float32),
        })
    return params


def model_forward(params, inputs, *, n_head):
    """Equivalent of Model.forward(inputs, past=None)."""
    # TODO(synk): `past` (KV-cache concatenation for incremental decoding) is not
    # implemented; only past=None is supported.
    B, S = inputs.shape
    wte = params["wte"]
    V, D = wte.shape
    Dh = D // n_head

    # Embedding gather + positional add (glue), then hidden states travel as bf16.
    h = (wte[inputs] + params["wpe"][:S][None, :, :]).astype(jnp.bfloat16)
    h = h.reshape(B * S, D)

    presents = []
    for blk in params["blocks"]:
        # --- attention: fused LN1 + QKV projection ---
        qkv = ln_matmul_bias(h, blk["ln1_g"], blk["ln1_b"],
                             blk["attn_w"].astype(jnp.bfloat16), blk["attn_b"])
        qkv = qkv.reshape(B, S, 3, n_head, Dh)
        q = qkv[:, :, 0].transpose(0, 2, 1, 3)          # (B, H, S, Dh)
        k = qkv[:, :, 1].transpose(0, 2, 1, 3)
        v = qkv[:, :, 2].transpose(0, 2, 1, 3)
        presents.append(jnp.stack([k, v], axis=0))       # (2, B, H, S, Dh)

        a = flash_attention(q.reshape(B * n_head, S, Dh),
                            k.reshape(B * n_head, S, Dh),
                            v.reshape(B * n_head, S, Dh))
        a = a.reshape(B, n_head, S, Dh).transpose(0, 2, 1, 3).reshape(B * S, D)
        # output projection + bias + residual fused in one kernel
        h = matmul_bias_residual(a, blk["proj_w"].astype(jnp.bfloat16),
                                 blk["proj_b"], h)

        # --- MLP: fused LN2 + FC + GELU, then proj + bias + residual ---
        m = ln_matmul_bias(h, blk["ln2_g"], blk["ln2_b"],
                           blk["fc_w"].astype(jnp.bfloat16), blk["fc_b"],
                           activation="gelu")
        h = matmul_bias_residual(m, blk["mlp_proj_w"].astype(jnp.bfloat16),
                                 blk["mlp_proj_b"], h)

    # tied LM head with fused final LayerNorm: logits = LN(h) @ wte.T
    logits = lnf_lm_head(h, params["lnf_g"], params["lnf_b"],
                         wte.astype(jnp.bfloat16)).reshape(B, S, V)

    present = jnp.stack(presents, axis=0)                # (n_layer, 2, B, H, S, Dh)
    return {"logits": logits, "present": present}


if __name__ == "__main__":
    # Lane-aligned small config (D multiple of 128, Dh=32) that still exercises
    # multi-step grids: vocab tiling in the LM head, K-tiled accumulator in the
    # MLP projection, and the online-softmax kv loop in attention.
    VOCAB, N_POS, N_EMBD, N_HEAD, N_LAYER = 1024, 128, 128, 4, 2
    B, S = 2, 128

    key = jax.random.PRNGKey(0)
    pkey, ikey = jax.random.split(key)
    params = init_params(pkey, vocab=VOCAB, n_positions=N_POS,
                         n_embd=N_EMBD, n_head=N_HEAD, n_layer=N_LAYER)
    inputs = jax.random.randint(ikey, (B, S), 0, VOCAB, dtype=jnp.int32)

    out = model_forward(params, inputs, n_head=N_HEAD)
    jax.block_until_ready(out)

    assert out["logits"].shape == (B, S, VOCAB)
    assert out["present"].shape == (N_LAYER, 2, B, N_HEAD, S, N_EMBD // N_HEAD)
    assert bool(jnp.isfinite(out["logits"]).all())
    print("KERNEL_OK")
</pallas_src>

<mosaic_0001>
module attributes {stable_mosaic.version = 11 : i64} {
  func.func @_ln_matmul_kernel(%arg0: i32, %arg1: i32, %arg2: memref<128x128xbf16, #tpu.memory_space<vmem>>, %arg3: memref<1x128xf32, #tpu.memory_space<vmem>>, %arg4: memref<1x128xf32, #tpu.memory_space<vmem>>, %arg5: memref<128x384xbf16, #tpu.memory_space<vmem>>, %arg6: memref<1x384xf32, #tpu.memory_space<vmem>>, %arg7: memref<128x384xbf16, #tpu.memory_space<vmem>>) attributes {dimension_semantics = [#tpu.dimension_semantics<parallel>, #tpu.dimension_semantics<parallel>], iteration_bounds = array<i64: 2, 1>, scalar_prefetch = 0 : i64, scratch_operands = 0 : i64, tpu.core_type = #tpu.core_type<tc>, window_params = [{transform_indices = @transform_0, window_bounds = array<i64: 128, 128>}, {pipeline_mode = #tpu.pipeline_mode<synchronous>, transform_indices = @transform_1, window_bounds = array<i64: 1, 128>}, {pipeline_mode = #tpu.pipeline_mode<synchronous>, transform_indices = @transform_2, window_bounds = array<i64: 1, 128>}, {transform_indices = @transform_3, window_bounds = array<i64: 128, 384>}, {transform_indices = @transform_4, window_bounds = array<i64: 1, 384>}, {transform_indices = @transform_5, window_bounds = array<i64: 128, 384>}]} {
    %c0 = arith.constant 0 : index
    %c0_0 = arith.constant 0 : index
    %0 = vector.load %arg2[%c0, %c0_0] : memref<128x128xbf16, #tpu.memory_space<vmem>>, vector<128x128xbf16>
    %1 = arith.extf %0 : vector<128x128xbf16> to vector<128x128xf32>
    %cst = arith.constant dense<0.000000e+00> : vector<128xf32>
    %2 = vector.multi_reduction <add>, %1, %cst [1] : vector<128x128xf32> to vector<128xf32>
    %3 = vector.shape_cast %2 : vector<128xf32> to vector<128x1xf32>
    %cst_1 = arith.constant 1.280000e+02 : f32
    %4 = vector.broadcast %cst_1 : f32 to vector<128x1xf32>
    %5 = arith.divf %3, %4 : vector<128x1xf32>
    %6 = vector.broadcast %5 : vector<128x1xf32> to vector<128x128xf32>
    %7 = arith.subf %1, %6 : vector<128x128xf32>
    %8 = arith.mulf %7, %7 : vector<128x128xf32>
    %cst_2 = arith.constant dense<0.000000e+00> : vector<128xf32>
    %9 = vector.multi_reduction <add>, %8, %cst_2 [1] : vector<128x128xf32> to vector<128xf32>
    %10 = vector.shape_cast %9 : vector<128xf32> to vector<128x1xf32>
    %cst_3 = arith.constant 1.280000e+02 : f32
    %11 = vector.broadcast %cst_3 : f32 to vector<128x1xf32>
    %12 = arith.divf %10, %11 : vector<128x1xf32>
    %13 = vector.broadcast %5 : vector<128x1xf32> to vector<128x128xf32>
    %14 = arith.subf %1, %13 : vector<128x128xf32>
    %cst_4 = arith.constant 9.99999974E-6 : f32
    %15 = vector.broadcast %cst_4 : f32 to vector<128x1xf32>
    %16 = arith.addf %12, %15 : vector<128x1xf32>
    %17 = math.rsqrt %16 : vector<128x1xf32>
    %18 = vector.broadcast %17 : vector<128x1xf32> to vector<128x128xf32>
    %19 = arith.mulf %14, %18 : vector<128x128xf32>
    %c0_5 = arith.constant 0 : index
    %c0_6 = arith.constant 0 : index
    %20 = vector.load %arg3[%c0_5, %c0_6] : memref<1x128xf32, #tpu.memory_space<vmem>>, vector<1x128xf32>
    %21 = vector.broadcast %20 : vector<1x128xf32> to vector<128x128xf32>
    %22 = arith.mulf %19, %21 : vector<128x128xf32>
    %c0_7 = arith.constant 0 : index
    %c0_8 = arith.constant 0 : index
    %23 = vector.load %arg4[%c0_7, %c0_8] : memref<1x128xf32, #tpu.memory_space<vmem>>, vector<1x128xf32>
    %24 = vector.broadcast %23 : vector<1x128xf32> to vector<128x128xf32>
    %25 = arith.addf %22, %24 : vector<128x128xf32>
    %26 = arith.truncf %25 : vector<128x128xf32> to vector<128x128xbf16>
    %c0_9 = arith.constant 0 : index
    %c0_10 = arith.constant 0 : index
    %27 = vector.load %arg5[%c0_9, %c0_10] : memref<128x384xbf16, #tpu.memory_space<vmem>>, vector<128x384xbf16>
    %cst_11 = arith.constant dense<0.000000e+00> : vector<128x384xf32>
    %28 = tpu.matmul %26, %27, %cst_11 {dimension_numbers = #tpu.dot_dimension_numbers<[1], [0], [0], [1], [0, 0, 1, 1], [], []>} : vector<128x128xbf16>, vector<128x384xbf16>, vector<128x384xf32> -> vector<128x384xf32>
    %c0_12 = arith.constant 0 : index
    %c0_13 = arith.constant 0 : index
    %29 = vector.load %arg6[%c0_12, %c0_13] : memref<1x384xf32, #tpu.memory_space<vmem>>, vector<1x384xf32>
    %30 = vector.broadcast %29 : vector<1x384xf32> to vector<128x384xf32>
    %31 = arith.addf %28, %30 : vector<128x384xf32>
    %32 = arith.truncf %31 : vector<128x384xf32> to vector<128x384xbf16>
    %c0_14 = arith.constant 0 : index
    %c0_15 = arith.constant 0 : index
    %33 = vector.load %arg7[%c0_14, %c0_15] : memref<128x384xbf16, #tpu.memory_space<vmem>>, vector<128x384xbf16>
    tpu.vector_store %arg7[%c0_14, %c0_15], %32 {strides = array<i32>} : memref<128x384xbf16, #tpu.memory_space<vmem>>, vector<128x384xbf16>,
    return
  }
  func.func @transform_0(%arg0: i32, %arg1: i32) -> (i32, i32) {
    %c0_i32 = arith.constant 0 : i32
    %c0_i32_0 = arith.constant 0 : i32
    return %arg0, %c0_i32 : i32, i32
  }
  func.func @transform_1(%arg0: i32, %arg1: i32) -> (i32, i32) {
    %c0_i32 = arith.constant 0 : i32
    %c0_i32_0 = arith.constant 0 : i32
    %c0_i32_1 = arith.constant 0 : i32
    return %c0_i32, %c0_i32_0 : i32, i32
  }
  func.func @transform_2(%arg0: i32, %arg1: i32) -> (i32, i32) {
    %c0_i32 = arith.constant 0 : i32
    %c0_i32_0 = arith.constant 0 : i32
    %c0_i32_1 = arith.constant 0 : i32
    return %c0_i32, %c0_i32_0 : i32, i32
  }
  func.func @transform_3(%arg0: i32, %arg1: i32) -> (i32, i32) {
    %c0_i32 = arith.constant 0 : i32
    %c0_i32_0 = arith.constant 0 : i32
    return %c0_i32, %arg1 : i32, i32
  }
  func.func @transform_4(%arg0: i32, %arg1: i32) -> (i32, i32) {
    %c0_i32 = arith.constant 0 : i32
    %c0_i32_0 = arith.constant 0 : i32
    return %c0_i32, %arg1 : i32, i32
  }
  func.func @transform_5(%arg0: i32, %arg1: i32) -> (i32, i32) {
    %c0_i32 = arith.constant 0 : i32
    return %arg0, %arg1 : i32, i32
  }
}

</mosaic_0001>

<llo_original>
// kernel: tpu_custom_call.1
$region0: #{tpu_custom_call.1}
  #allocation0 [shape = 'u32[]', space=smem, size = 0x4, offset = 0x4, fixed_abs, tag = 'smem constant byte address 0x4 - core index']
  #allocation1 [shape = 'u32[72,128]{1,0:T(1,128)}', space=vmem, size = 0x9000, scoped, tag = 'internal scratch']
  %s0 = inlined_call_operand.hbm [shape: bf16[256,128], index: 0, kind: input, shape index: {}]
  %s1 = inlined_call_operand.hbm [shape: f32[1,128], index: 1, kind: input, shape index: {}]
  %s2 = inlined_call_operand.hbm [shape: f32[1,128], index: 2, kind: input, shape index: {}]
  %s3 = inlined_call_operand.hbm [shape: bf16[128,384], index: 3, kind: input, shape index: {}]
  %s4 = inlined_call_operand.vmem [shape: f32[1,384], index: 4, kind: input, shape index: {}]
  %s5 = inlined_call_operand.hbm [shape: bf16[256,384], index: 5, kind: output, shape index: {}]
  %s6 = sld [smem:[#allocation0]]
  $region69: #{tpu_custom_call.1} parent=0
    _
  %s8 = ssub.s32 1, %s6
  %s9 = scalar_select 0, %s8, %s6
  $region1: #{tpu_custom_call.1} parent=0
    #allocation2 [shape = 'u8[65536]{0}', space=vmem, size = 0x10000, scoped, tag = 'input window, operand 0']
    #allocation3 [shape = 's32[2]{0}', space=sflag, size = 0x8, scoped, tag = 'scoped memory for tpu_custom_call.1']
    #allocation4 [shape = 's32[2]{0}', space=sflag, size = 0x8, scoped, tag = 'scoped memory for tpu_custom_call.1']
    #allocation5 [shape = 'u8[512]{0}', space=vmem, size = 0x400, scoped, tag = 'input window, operand 1, single buffered']
    #allocation6 [shape = 's32[1]{0}', space=sflag, size = 0x4, scoped, tag = 'scoped memory for tpu_custom_call.1']
    #allocation7 [shape = 'u8[512]{0}', space=vmem, size = 0x400, scoped, tag = 'input window, operand 2, single buffered']
    #allocation8 [shape = 'u8[98304]{0}', space=vmem, size = 0x18000, scoped, tag = 'input window, operand 3, single buffered']
    #allocation9 [shape = 's32[1]{0}', space=sflag, size = 0x4, scoped, tag = 'scoped memory for tpu_custom_call.1']
    #allocation10 [shape = 'u8[196608]{0}', space=vmem, size = 0x30000, scoped, tag = 'output window, operand 0']
    %10 = vsyncpa [#allocation3], 0
    %s11 = scalar_lea.sflag [#allocation3], 1
    %12 = vsyncpa %s11, 0
    %13 = vsyncpa [#allocation6], 0
    %14 = vsyncpa [#allocation9], 0
    %15 = vsyncpa [#allocation4], 0
    %s16 = scalar_lea.sflag [#allocation4], 1
    %17 = vsyncpa %s16, 0
    loop: start=0, step=1, limit=4
    $region2: #{tpu_custom_call.1} parent=1 // loop_pre_header
      _
    $region3: #{tpu_custom_call.1} parent=1 // loop_header
      %s19 = sphi 0, %s23
      %p20 = scmp.ge.s32.totalorder %s19, 4
      %s26 = sphi 0, %s38
      %s27 = sphi 0, %s34
      %s28 = sphi 0, %s26
      %s29 = sphi 0, %s27
      %s30 = sphi 0, %s28
      %s31 = sphi 0, %s29
      %s41 = sphi 0, %s43
      %s44 = sphi 0, %s41
      %s45 = sphi 0, %s44
      %s61 = sphi 0, %s45
      %s65 = sphi 0, %s65
      %s67 = sphi 0, %s65
      %s68 = sphi 0, %s67
      %s82 = sphi 0, %s68
      %s86 = sphi 0, %s86
      %s88 = sphi 0, %s86
      %s89 = sphi 0, %s88
      %s103 = sphi 0, %s89
      %s109 = sphi 0, %s111
      %s112 = sphi 0, %s109
      %s113 = sphi 0, %s112
      %s129 = sphi 0, %s113
      %s135 = sphi 0, %s137
      %s138 = sphi 0, %s135
      %s139 = sphi 0, %s138
      %s155 = sphi 0, %s139
      %s163 = sphi 0, %s165
      %s166 = sphi 0, %s163
      %s167 = sphi 0, %s166
      %s183 = sphi 0, %s167
    $region4: #{tpu_custom_call.1} parent=1 // loop_header_branch
      %22 = sbr.rel (%p20) target = $region8
    $region5: #{tpu_custom_call.1} parent=1 // loop_body
      %s24 = ssub.s32 %s19, 1
      %s25 = ssub.s32 %s19, 2
      %s32 = sadd.s32 1, %s27
      %p33 = scmp.ge.s32.totalorder %s32, 1
      %s34 = scalar_select %p33, 0, %s32
      %s35 = sadd.s32 1, %s26
      %s36 = scalar_select %p33, %s35, %s26
      %p37 = scmp.ge.s32.totalorder %s36, 2
      %s38 = scalar_select %p37, 0, %s36
      %s39 = ssub.s32 %s26, %s38
      %p40 = scmp.eq.s32.totalorder %s39, 0
      %s42 = sadd.s32 %s41, 1
      %s43 = scalar_select %p40, %s41, %s42
      %p46 = pneg %p40
      %p47 = scmp.eq.s32.totalorder %s19, 1
      %p48 = por %p46, %p47
      %p49 = scmp.ne.s32.totalorder %s41, %s44
      %p50 = scmp.eq.s32.totalorder %s19, 0
      %p51 = por %p49, %p50
      %p52 = scmp.ne.s32.totalorder %s41, %s44
      %p53 = scmp.eq.s32.totalorder %s24, 1
      %p54 = por %p52, %p53
      %p55 = scmp.ne.s32.totalorder %s44, %s45
      %p56 = scmp.eq.s32.totalorder %s24, 0
      %p57 = por %p55, %p56
      %p58 = scmp.ne.s32.totalorder %s44, %s45
      %p59 = scmp.eq.s32.totalorder %s25, 1
      %p60 = por %p58, %p59
      %p62 = scmp.ne.s32.totalorder %s45, %s61
      %p63 = scmp.eq.s32.totalorder %s25, 0
      %p64 = por %p62, %p63
      %s66 = sadd.s32 %s65, 1
      %p69 = scmp.eq.s32.totalorder %s19, 1
      %p70 = scmp.ne.s32.totalorder %s65, %s67
      %p71 = scmp.eq.s32.totalorder %s19, 0
      %p72 = por %p70, %p71
      %p73 = scmp.ne.s32.totalorder %s65, %s67
      %p74 = scmp.eq.s32.totalorder %s24, 1
      %p75 = por %p73, %p74
      %p76 = scmp.ne.s32.totalorder %s67, %s68
      %p77 = scmp.eq.s32.totalorder %s24, 0
      %p78 = por %p76, %p77
      %p79 = scmp.ne.s32.totalorder %s67, %s68
      %p80 = scmp.eq.s32.totalorder %s25, 1
      %p81 = por %p79, %p80
      %p83 = scmp.ne.s32.totalorder %s68, %s82
      %p84 = scmp.eq.s32.totalorder %s25, 0
      %p85 = por %p83, %p84
      %s87 = sadd.s32 %s86, 1
      %p90 = scmp.eq.s32.totalorder %s19, 1
      %p91 = scmp.ne.s32.totalorder %s86, %s88
      %p92 = scmp.eq.s32.totalorder %s19, 0
      %p93 = por %p91, %p92
      %p94 = scmp.ne.s32.totalorder %s86, %s88
      %p95 = scmp.eq.s32.totalorder %s24, 1
      %p96 = por %p94, %p95
      %p97 = scmp.ne.s32.totalorder %s88, %s89
      %p98 = scmp.eq.s32.totalorder %s24, 0
      %p99 = por %p97, %p98
      %p100 = scmp.ne.s32.totalorder %s88, %s89
      %p101 = scmp.eq.s32.totalorder %s25, 1
      %p102 = por %p100, %p101
      %p104 = scmp.ne.s32.totalorder %s89, %s103
      %p105 = scmp.eq.s32.totalorder %s25, 0
      %p106 = por %p104, %p105
      %s107 = ssub.s32 %s27, %s34
      %p108 = scmp.eq.s32.totalorder %s107, 0
      %s110 = sadd.s32 %s109, 1
      %s111 = scalar_select %p108, %s109, %s110
      %p114 = pneg %p108
      %p115 = scmp.eq.s32.totalorder %s19, 1
      %p116 = por %p114, %p115
      %p117 = scmp.ne.s32.totalorder %s109, %s112
      %p118 = scmp.eq.s32.totalorder %s19, 0
      %p119 = por %p117, %p118
      %p120 = scmp.ne.s32.totalorder %s109, %s112
      %p121 = scmp.eq.s32.totalorder %s24, 1
      %p122 = por %p120, %p121
      %p123 = scmp.ne.s32.totalorder %s112, %s113
      %p124 = scmp.eq.s32.totalorder %s24, 0
      %p125 = por %p123, %p124
      %p126 = scmp.ne.s32.totalorder %s112, %s113
      %p127 = scmp.eq.s32.totalorder %s25, 1
      %p128 = por %p126, %p127
      %p130 = scmp.ne.s32.totalorder %s113, %s129
      %p131 = scmp.eq.s32.totalorder %s25, 0
      %p132 = por %p130, %p131
      %s133 = ssub.s32 %s27, %s34
      %p134 = scmp.eq.s32.totalorder %s133, 0
      %s136 = sadd.s32 %s135, 1
      %s137 = scalar_select %p134, %s135, %s136
      %p140 = pneg %p134
      %p141 = scmp.eq.s32.totalorder %s19, 1
      %p142 = por %p140, %p141
      %p143 = scmp.ne.s32.totalorder %s135, %s138
      %p144 = scmp.eq.s32.totalorder %s19, 0
      %p145 = por %p143, %p144
      %p146 = scmp.ne.s32.totalorder %s135, %s138
      %p147 = scmp.eq.s32.totalorder %s24, 1
      %p148 = por %p146, %p147
      %p149 = scmp.ne.s32.totalorder %s138, %s139
      %p150 = scmp.eq.s32.totalorder %s24, 0
      %p151 = por %p149, %p150
      %p152 = scmp.ne.s32.totalorder %s138, %s139
      %p153 = scmp.eq.s32.totalorder %s25, 1
      %p154 = por %p152, %p153
      %p156 = scmp.ne.s32.totalorder %s139, %s155
      %p157 = scmp.eq.s32.totalorder %s25, 0
      %p158 = por %p156, %p157
      %s159 = ssub.s32 %s26, %s38
      %s160 = ssub.s32 %s27, %s34
      %s161 = sor.u32 %s159, %s160
      %p162 = scmp.eq.s32.totalorder %s161, 0
      %s164 = sadd.s32 %s163, 1
      %s165 = scalar_select %p162, %s163, %s164
      %p168 = pneg %p162
      %p169 = scmp.eq.s32.totalorder %s19, 1
      %p170 = por %p168, %p169
      %p171 = scmp.ne.s32.totalorder %s163, %s166
      %p172 = scmp.eq.s32.totalorder %s19, 0
      %p173 = por %p171, %p172
      %p174 = scmp.ne.s32.totalorder %s163, %s166
      %p175 = scmp.eq.s32.totalorder %s24, 1
      %p176 = por %p174, %p175
      %p177 = scmp.ne.s32.totalorder %s166, %s167
      %p178 = scmp.eq.s32.totalorder %s24, 0
      %p179 = por %p177, %p178
      %p180 = scmp.ne.s32.totalorder %s166, %s167
      %p181 = scmp.eq.s32.totalorder %s25, 1
      %p182 = por %p180, %p181
      %p184 = scmp.ne.s32.totalorder %s167, %s183
      %p185 = scmp.eq.s32.totalorder %s25, 0
      %p186 = por %p184, %p185
      %p187 = scmp.le.s32.totalorder 1, %s19
      %p188 = scmp.lt.s32.totalorder %s19, 3
      %p189 = pnand %p187, %p188
      %p190 = pneg %p189
      // Predicated region
      $region9: #{tpu_custom_call.1} parent=5 // pred_check
        _
      $region10: #{tpu_custom_call.1} parent=5 // pred_check_branch
        %192 = sbr.rel (%p189) target = $region12
      $region11: #{tpu_custom_call.1} parent=5 // pred_region
        %s193 = ssub.s32 %s19, 1
        // Predicated region
        $region13: #{tpu_custom_call.1} parent=11 // pred_check
          %p194 = pneg %p78
        $region14: #{tpu_custom_call.1} parent=11 // pred_check_branch
          %196 = sbr.rel (%p194) target = $region16
        $region15: #{tpu_custom_call.1} parent=11 // pred_region
          %198 = vsyncadd [#allocation6], 0
          %s200 = sshll.u32 %s1, 4
          %s201 = int_to_ptr.hbm [resolvable:$true] %s200
          %s202 = sshll.u32 [#allocation5], 4
          %s203 = int_to_ptr.vmem [resolvable:$true] %s202
          %205 = dma.hbm_to_vmem [thread:$0]  %s201, 16, %s203, [#allocation6]
        $region16: #{tpu_custom_call.1} parent=11 // pred_fallthru
          _
        // Predicated region
        $region17: #{tpu_custom_call.1} parent=11 // pred_check
          %p206 = pneg %p99
        $region18: #{tpu_custom_call.1} parent=11 // pred_check_branch
          %208 = sbr.rel (%p206) target = $region20
        $region19: #{tpu_custom_call.1} parent=11 // pred_region
          %210 = vsyncadd [#allocation6], 0
          %s212 = sshll.u32 %s2, 4
          %s213 = int_to_ptr.hbm [resolvable:$true] %s212
          %s214 = sshll.u32 [#allocation7], 4
          %s215 = int_to_ptr.vmem [resolvable:$true] %s214
          %217 = dma.hbm_to_vmem [thread:$0]  %s213, 16, %s215, [#allocation6]
        $region20: #{tpu_custom_call.1} parent=11 // pred_fallthru
          _
        // Predicated region
        $region21: #{tpu_custom_call.1} parent=11 // pred_check
          %p218 = pneg %p125
        $region22: #{tpu_custom_call.1} parent=11 // pred_check_branch
          %220 = sbr.rel (%p218) target = $region24
        $region23: #{tpu_custom_call.1} parent=11 // pred_region
          %s221 = smul.u32 3, %s29
          %223 = vsyncadd [#allocation9], 0
          %s224 = smul.addr %s221, 4
          %s225 = scalar_lea.hbm %s3, %s224
          %s226 = sshll.u32 %s225, 4
          %s227 = int_to_ptr.hbm [resolvable:$true] %s226
          %s228 = sshll.u32 [#allocation8], 4
          %s229 = int_to_ptr.vmem [resolvable:$true] %s228
          %234 = dma.hbm_to_vmem [thread:$0]  %s227, 3072, %s229, [#allocation9], 192, 192, 12
        $region24: #{tpu_custom_call.1} parent=11 // pred_fallthru
          _
        // Predicated region
        $region25: #{tpu_custom_call.1} parent=11 // pred_check
          %p235 = pneg %p151
        $region26: #{tpu_custom_call.1} parent=11 // pred_check_branch
          %237 = sbr.rel (%p235) target = $region28
        $region27: #{tpu_custom_call.1} parent=11 // pred_region
          %s238 = smul.u32 3, %s29
          %p239 = scmp.lt.s32.totalorder %s238, 2
          %s240 = scalar_select %p239, %s238, 2
          %s241 = scalar_lea.vmem %s4, %s240
          %s242 = smul.u32 3, %s29
        $region28: #{tpu_custom_call.1} parent=11 // pred_fallthru
          _
      $region12: #{tpu_custom_call.1} parent=5 // pred_fallthru
        _
      %p243 = scmp.lt.s32.totalorder %s19, 2
      // Predicated region
      $region29: #{tpu_custom_call.1} parent=5 // pred_check
        %p244 = pneg %p243
      $region30: #{tpu_custom_call.1} parent=5 // pred_check_branch
        %246 = sbr.rel (%p244) target = $region32
      $region31: #{tpu_custom_call.1} parent=5 // pred_region
        // Predicated region
        $region33: #{tpu_custom_call.1} parent=31 // pred_check
          %p247 = pneg %p51
        $region34: #{tpu_custom_call.1} parent=31 // pred_check_branch
          %249 = sbr.rel (%p247) target = $region36
        $region35: #{tpu_custom_call.1} parent=31 // pred_region
          %s250 = sand.u32 %s41, 1
          %s251 = scalar_lea.sflag [#allocation3], %s250
          %s252 = sand.u32 %s41, 1
          %s253 = smul.addr %s252, 64
          %s254 = scalar_lea.vmem [#allocation2], %s253
          %s255 = smul.u32 16, %s26
          %257 = vsyncadd %s251, 0
          %s258 = smul.addr %s255, 4
          %s259 = scalar_lea.hbm %s0, %s258
          %s260 = sshll.u32 %s259, 4
          %s261 = int_to_ptr.hbm [resolvable:$true] %s260
          %s262 = sshll.u32 %s254, 4
          %s263 = int_to_ptr.vmem [resolvable:$true] %s262
          %268 = dma.hbm_to_vmem [thread:$0]  %s261, 1024, %s263, %s251, 64, 64, 4
        $region36: #{tpu_custom_call.1} parent=31 // pred_fallthru
          _
      $region32: #{tpu_custom_call.1} parent=5 // pred_fallthru
        _
      %p269 = scmp.le.s32.totalorder 1, %s19
      %p270 = scmp.lt.s32.totalorder %s19, 3
      %p271 = pnand %p269, %p270
      %p272 = pneg %p271
      // Predicated region
      $region37: #{tpu_custom_call.1} parent=5 // pred_check
        _
      $region38: #{tpu_custom_call.1} parent=5 // pred_check_branch
        %274 = sbr.rel (%p271) target = $region40
      $region39: #{tpu_custom_call.1} parent=5 // pred_region
        %s275 = ssub.s32 %s19, 1
        %s276 = sand.u32 %s44, 1
        %s277 = scalar_lea.sflag [#allocation3], %s276
        %s278 = sand.u32 %s44, 1
        %s279 = smul.addr %s278, 64
        %s280 = scalar_lea.vmem [#allocation2], %s279
        // Predicated region
        $region41: #{tpu_custom_call.1} parent=39 // pred_check
          %p281 = pneg %p57
        $region42: #{tpu_custom_call.1} parent=39 // pred_check_branch
          %283 = sbr.rel (%p281) target = $region44
        $region43: #{tpu_custom_call.1} parent=39 // pred_region
          %285 = dma.done %s277, 1024
        $region44: #{tpu_custom_call.1} parent=39 // pred_fallthru
          _
        // Predicated region
        $region45: #{tpu_custom_call.1} parent=39 // pred_check
          %p286 = pneg %p78
        $region46: #{tpu_custom_call.1} parent=39 // pred_check_branch
          %288 = sbr.rel (%p286) target = $region48
        $region47: #{tpu_custom_call.1} parent=39 // pred_region
          %290 = dma.done [#allocation6], 16
        $region48: #{tpu_custom_call.1} parent=39 // pred_fallthru
          _
        // Predicated region
        $region49: #{tpu_custom_call.1} parent=39 // pred_check
          %p291 = pneg %p99
        $region50: #{tpu_custom_call.1} parent=39 // pred_check_branch
          %293 = sbr.rel (%p291) target = $region52
        $region51: #{tpu_custom_call.1} parent=39 // pred_region
          %295 = dma.done [#allocation6], 16
        $region52: #{tpu_custom_call.1} parent=39 // pred_fallthru
          _
        // Predicated region
        $region53: #{tpu_custom_call.1} parent=39 // pred_check
          %p296 = pneg %p125
        $region54: #{tpu_custom_call.1} parent=39 // pred_check_branch
          %298 = sbr.rel (%p296) target = $region56
        $region55: #{tpu_custom_call.1} parent=39 // pred_region
          %300 = dma.done [#allocation9], 3072
        $region56: #{tpu_custom_call.1} parent=39 // pred_fallthru
          _
        %s301 = sand.u32 %s44, 1
        %s302 = scalar_lea.sflag [#allocation3], %s301
        %s303 = sand.u32 %s44, 1
        %s304 = smul.addr %s303, 64
        %s305 = scalar_lea.vmem [#allocation2], %s304
        %p306 = pneg %p57
        %p307 = pneg %p54
        %p308 = pneg %p78
        %p309 = pneg %p75
        %p310 = pneg %p99
        %p311 = pneg %p96
        %p312 = pneg %p125
        %p313 = pneg %p122
        %s314 = smul.u32 3, %s29
        %p315 = scmp.lt.s32.totalorder %s314, 2
        %s316 = scalar_select %p315, %s314, 2
        %s317 = scalar_lea.vmem %s4, %s316
        %p318 = pneg %p151
        %p319 = pneg %p148
        %p320 = pneg %p179
        %p321 = pneg %p176
        %s322 = sand.u32 %s166, 1
        %s323 = scalar_lea.sflag [#allocation4], %s322
        %s324 = sand.u32 %s166, 1
        %s325 = smul.addr %s324, 192
        %s326 = scalar_lea.vmem [#allocation10], %s325
        %s327 = smul.u32 16, %s28
        %s328 = smul.u32 3, %s29
        %s329 = smul.u32 3, %s29
        %p330 = scmp.lt.s32.totalorder %s329, 2
        %s331 = scalar_select %p330, %s329, 2
        %s332 = scalar_lea.vmem %s4, %s331
        %s333 = smul.u32 3, %s29
        %s334 = smul.u32 16, %s28
        %s335 = smul.u32 3, %s29
        %v336 = vld [vmem:[%s280] sm:$0xf]
        %v337 = vld [vmem:[%s280 + $0x4] sm:$0xf]
        %v338 = vld [vmem:[%s280 + $0x8] sm:$0xf]
        %v339 = vld [vmem:[%s280 + $0xc] sm:$0xf]
        %v340 = vld [vmem:[%s280 + $0x10] sm:$0xf]
        %v341 = vld [vmem:[%s280 + $0x14] sm:$0xf]
        %v342 = vld [vmem:[%s280 + $0x18] sm:$0xf]
        %v343 = vld [vmem:[%s280 + $0x1c] sm:$0xf]
        %v344 = vld [vmem:[%s280 + $0x20] sm:$0xf]
        %v345 = vld [vmem:[%s280 + $0x24] sm:$0xf]
        %v346 = vld [vmem:[%s280 + $0x28] sm:$0xf]
        %v347 = vld [vmem:[%s280 + $0x2c] sm:$0xf]
        %v348 = vld [vmem:[%s280 + $0x30] sm:$0xf]
        %v349 = vld [vmem:[%s280 + $0x34] sm:$0xf]
        %v350 = vld [vmem:[%s280 + $0x38] sm:$0xf]
        %v351 = vld [vmem:[%s280 + $0x3c] sm:$0xf]
        %v352 = vunpack.c.l.bf16 %v336
        %v353 = vunpack.c.l.bf16 %v337
        %v354 = vunpack.c.l.bf16 %v338
        %v355 = vunpack.c.l.bf16 %v339
        %v356 = vunpack.c.l.bf16 %v340
        %v357 = vunpack.c.l.bf16 %v341
        %v358 = vunpack.c.l.bf16 %v342
        %v359 = vunpack.c.l.bf16 %v343
        %v360 = vunpack.c.l.bf16 %v344
        %v361 = vunpack.c.l.bf16 %v345
        %v362 = vunpack.c.l.bf16 %v346
        %v363 = vunpack.c.l.bf16 %v347
        %v364 = vunpack.c.l.bf16 %v348
        %v365 = vunpack.c.l.bf16 %v349
        %v366 = vunpack.c.l.bf16 %v350
        %v367 = vunpack.c.l.bf16 %v351
        %368 = vadd.xlane.f32.xlu0 %v352
        %v369 = vpop.xlane.xlu0 %368
        %370 = vadd.xlane.f32.xlu0 %v353
        %v371 = vpop.xlane.xlu0 %370
        %372 = vadd.xlane.f32.xlu0 %v354
        %v373 = vpop.xlane.xlu0 %372
        %374 = vadd.xlane.f32.xlu0 %v355
        %v375 = vpop.xlane.xlu0 %374
        %376 = vadd.xlane.f32.xlu0 %v356
        %v377 = vpop.xlane.xlu0 %376
        %378 = vadd.xlane.f32.xlu0 %v357
        %v379 = vpop.xlane.xlu0 %378
        %380 = vadd.xlane.f32.xlu0 %v358
        %v381 = vpop.xlane.xlu0 %380
        %382 = vadd.xlane.f32.xlu0 %v359
        %v383 = vpop.xlane.xlu0 %382
        %384 = vadd.xlane.f32.xlu0 %v360
        %v385 = vpop.xlane.xlu0 %384
        %386 = vadd.xlane.f32.xlu0 %v361
        %v387 = vpop.xlane.xlu0 %386
        %388 = vadd.xlane.f32.xlu0 %v362
        %v389 = vpop.xlane.xlu0 %388
        %390 = vadd.xlane.f32.xlu0 %v363
        %v391 = vpop.xlane.xlu0 %390
        %392 = vadd.xlane.f32.xlu0 %v364
        %v393 = vpop.xlane.xlu0 %392
        %394 = vadd.xlane.f32.xlu0 %v365
        %v395 = vpop.xlane.xlu0 %394
        %396 = vadd.xlane.f32.xlu0 %v366
        %v397 = vpop.xlane.xlu0 %396
        %398 = vadd.xlane.f32.xlu0 %v367
        %v399 = vpop.xlane.xlu0 %398
        %v400 = vrcp.pop 128.0
        %v401 = vmul.f32 128.0, %v400
        %v402 = vsub.f32 1.0, %v401
        %v403 = vmul.f32 %v400, %v402
        %v404 = vadd.f32 %v400, %v403
        %vm405 = vweird.f32 %v400
        %v406 = vsel %vm405, %v400, %v404
        %v407 = vmul.f32 %v369, %v406
        %v408 = vmul.f32 %v371, %v406
        %v409 = vmul.f32 %v373, %v406
        %v410 = vmul.f32 %v375, %v406
        %v411 = vmul.f32 %v377, %v406
        %v412 = vmul.f32 %v379, %v406
        %v413 = vmul.f32 %v381, %v406
        %v414 = vmul.f32 %v383, %v406
        %v415 = vmul.f32 %v385, %v406
        %v416 = vmul.f32 %v387, %v406
        %v417 = vmul.f32 %v389, %v406
        %v418 = vmul.f32 %v391, %v406
        %v419 = vmul.f32 %v393, %v406
        %v420 = vmul.f32 %v395, %v406
        %v421 = vmul.f32 %v397, %v406
        %v422 = vmul.f32 %v399, %v406
        %v423 = vsub.f32 %v352, %v407
        %v424 = vsub.f32 %v353, %v408
        %v425 = vsub.f32 %v354, %v409
        %v426 = vsub.f32 %v355, %v410
        %v427 = vsub.f32 %v356, %v411
        %v428 = vsub.f32 %v357, %v412
        %v429 = vsub.f32 %v358, %v413
        %v430 = vsub.f32 %v359, %v414
        %v431 = vsub.f32 %v360, %v415
        %v432 = vsub.f32 %v361, %v416
        %v433 = vsub.f32 %v362, %v417
        %v434 = vsub.f32 %v363, %v418
        %v435 = vsub.f32 %v364, %v419
        %v436 = vsub.f32 %v365, %v420
        %v437 = vsub.f32 %v366, %v421
        %v438 = vsub.f32 %v367, %v422
        %v439 = vmul.f32 %v423, %v423
        %v440 = vmul.f32 %v424, %v424
        %v441 = vmul.f32 %v425, %v425
        %v442 = vmul.f32 %v426, %v426
        %v443 = vmul.f32 %v427, %v427
        %v444 = vmul.f32 %v428, %v428
        %v445 = vmul.f32 %v429, %v429
        %v446 = vmul.f32 %v430, %v430
        %v447 = vmul.f32 %v431, %v431
        %v448 = vmul.f32 %v432, %v432
        %v449 = vmul.f32 %v433, %v433
        %v450 = vmul.f32 %v434, %v434
        %v451 = vmul.f32 %v435, %v435
        %v452 = vmul.f32 %v436, %v436
        %v453 = vmul.f32 %v437, %v437
        %v454 = vmul.f32 %v438, %v438
        %455 = vadd.xlane.f32.xlu0 %v439
        %v456 = vpop.xlane.xlu0 %455
        %457 = vadd.xlane.f32.xlu0 %v440
        %v458 = vpop.xlane.xlu0 %457
        %459 = vadd.xlane.f32.xlu0 %v441
        %v460 = vpop.xlane.xlu0 %459
        %461 = vadd.xlane.f32.xlu0 %v442
        %v462 = vpop.xlane.xlu0 %461
        %463 = vadd.xlane.f32.xlu0 %v443
        %v464 = vpop.xlane.xlu0 %463
        %465 = vadd.xlane.f32.xlu0 %v444
        %v466 = vpop.xlane.xlu0 %465
        %467 = vadd.xlane.f32.xlu0 %v445
        %v468 = vpop.xlane.xlu0 %467
        %469 = vadd.xlane.f32.xlu0 %v446
        %v470 = vpop.xlane.xlu0 %469
        %471 = vadd.xlane.f32.xlu0 %v447
        %v472 = vpop.xlane.xlu0 %471
        %473 = vadd.xlane.f32.xlu0 %v448
        %v474 = vpop.xlane.xlu0 %473
        %475 = vadd.xlane.f32.xlu0 %v449
        %v476 = vpop.xlane.xlu0 %475
        %477 = vadd.xlane.f32.xlu0 %v450
        %v478 = vpop.xlane.xlu0 %477
        %479 = vadd.xlane.f32.xlu0 %v451
        %v480 = vpop.xlane.xlu0 %479
        %481 = vadd.xlane.f32.xlu0 %v452
        %v482 = vpop.xlane.xlu0 %481
        %483 = vadd.xlane.f32.xlu0 %v453
        %v484 = vpop.xlane.xlu0 %483
        %485 = vadd.xlane.f32.xlu0 %v454
        %v486 = vpop.xlane.xlu0 %485
        %v487 = vmul.f32 %v456, %v406
        %v488 = vmul.f32 %v458, %v406
        %v489 = vmul.f32 %v460, %v406
        %v490 = vmul.f32 %v462, %v406
        %v491 = vmul.f32 %v464, %v406
        %v492 = vmul.f32 %v466, %v406
        %v493 = vmul.f32 %v468, %v406
        %v494 = vmul.f32 %v470, %v406
        %v495 = vmul.f32 %v472, %v406
        %v496 = vmul.f32 %v474, %v406
        %v497 = vmul.f32 %v476, %v406
        %v498 = vmul.f32 %v478, %v406
        %v499 = vmul.f32 %v480, %v406
        %v500 = vmul.f32 %v482, %v406
        %v501 = vmul.f32 %v484, %v406
        %v502 = vmul.f32 %v486, %v406
        %v503 = vadd.f32 %v487, 1e-05
        %v504 = vadd.f32 %v488, 1e-05
        %v505 = vadd.f32 %v489, 1e-05
        %v506 = vadd.f32 %v490, 1e-05
        %v507 = vadd.f32 %v491, 1e-05
        %v508 = vadd.f32 %v492, 1e-05
        %v509 = vadd.f32 %v493, 1e-05
        %v510 = vadd.f32 %v494, 1e-05
        %v511 = vadd.f32 %v495, 1e-05
        %v512 = vadd.f32 %v496, 1e-05
        %v513 = vadd.f32 %v497, 1e-05
        %v514 = vadd.f32 %v498, 1e-05
        %v515 = vadd.f32 %v499, 1e-05
        %v516 = vadd.f32 %v500, 1e-05
        %v517 = vadd.f32 %v501, 1e-05
        %v518 = vadd.f32 %v502, 1e-05
        %v519 = vrsqrt.pop %v503
        %v520 = vmul.f32 %v519, %v503
        %v521 = vmul.f32 %v520, %v519
        %v522 = vmul.f32 0.5, %v521
        %v523 = vsub.f32 1.5, %v522
        %v524 = vmul.f32 %v519, %v523
        %vm525 = vweird.f32 %v503
        %vm526 = vweird.f32 %v519
        %vm527 = vmor %vm525, %vm526
        %v528 = vsel %vm527, %v519, %v524
        %v529 = vrsqrt.pop %v504
        %v530 = vmul.f32 %v529, %v504
        %v531 = vmul.f32 %v530, %v529
        %v532 = vmul.f32 0.5, %v531
        %v533 = vsub.f32 1.5, %v532
        %v534 = vmul.f32 %v529, %v533
        %vm535 = vweird.f32 %v504
        %vm536 = vweird.f32 %v529
        %vm537 = vmor %vm535, %vm536
        %v538 = vsel %vm537, %v529, %v534
        %v539 = vrsqrt.pop %v505
        %v540 = vmul.f32 %v539, %v505
        %v541 = vmul.f32 %v540, %v539
        %v542 = vmul.f32 0.5, %v541
        %v543 = vsub.f32 1.5, %v542
        %v544 = vmul.f32 %v539, %v543
        %vm545 = vweird.f32 %v505
        %vm546 = vweird.f32 %v539
        %vm547 = vmor %vm545, %vm546
        %v548 = vsel %vm547, %v539, %v544
        %v549 = vrsqrt.pop %v506
        %v550 = vmul.f32 %v549, %v506
        %v551 = vmul.f32 %v550, %v549
        %v552 = vmul.f32 0.5, %v551
        %v553 = vsub.f32 1.5, %v552
        %v554 = vmul.f32 %v549, %v553
        %vm555 = vweird.f32 %v506
        %vm556 = vweird.f32 %v549
        %vm557 = vmor %vm555, %vm556
        %v558 = vsel %vm557, %v549, %v554
        %v559 = vrsqrt.pop %v507
        %v560 = vmul.f32 %v559, %v507
        %v561 = vmul.f32 %v560, %v559
        %v562 = vmul.f32 0.5, %v561
        %v563 = vsub.f32 1.5, %v562
        %v564 = vmul.f32 %v559, %v563
        %vm565 = vweird.f32 %v507
        %vm566 = vweird.f32 %v559
        %vm567 = vmor %vm565, %vm566
        %v568 = vsel %vm567, %v559, %v564
        %v569 = vrsqrt.pop %v508
        %v570 = vmul.f32 %v569, %v508
        %v571 = vmul.f32 %v570, %v569
        %v572 = vmul.f32 0.5, %v571
        %v573 = vsub.f32 1.5, %v572
        %v574 = vmul.f32 %v569, %v573
        %vm575 = vweird.f32 %v508
        %vm576 = vweird.f32 %v569
        %vm577 = vmor %vm575, %vm576
        %v578 = vsel %vm577, %v569, %v574
        %v579 = vrsqrt.pop %v509
        %v580 = vmul.f32 %v579, %v509
        %v581 = vmul.f32 %v580, %v579
        %v582 = vmul.f32 0.5, %v581
        %v583 = vsub.f32 1.5, %v582
        %v584 = vmul.f32 %v579, %v583
        %vm585 = vweird.f32 %v509
        %vm586 = vweird.f32 %v579
        %vm587 = vmor %vm585, %vm586
        %v588 = vsel %vm587, %v579, %v584
        %v589 = vrsqrt.pop %v510
        %v590 = vmul.f32 %v589, %v510
        %v591 = vmul.f32 %v590, %v589
        %v592 = vmul.f32 0.5, %v591
        %v593 = vsub.f32 1.5, %v592
        %v594 = vmul.f32 %v589, %v593
        %vm595 = vweird.f32 %v510
        %vm596 = vweird.f32 %v589
        %vm597 = vmor %vm595, %vm596
        %v598 = vsel %vm597, %v589, %v594
        %v599 = vrsqrt.pop %v511
        %v600 = vmul.f32 %v599, %v511
        %v601 = vmul.f32 %v600, %v599
        %v602 = vmul.f32 0.5, %v601
        %v603 = vsub.f32 1.5, %v602
        %v604 = vmul.f32 %v599, %v603
        %vm605 = vweird.f32 %v511
        %vm606 = vweird.f32 %v599
        %vm607 = vmor %vm605, %vm606
        %v608 = vsel %vm607, %v599, %v604
        %v609 = vrsqrt.pop %v512
        %v610 = vmul.f32 %v609, %v512
        %v611 = vmul.f32 %v610, %v609
        %v612 = vmul.f32 0.5, %v611
        %v613 = vsub.f32 1.5, %v612
        %v614 = vmul.f32 %v609, %v613
        %vm615 = vweird.f32 %v512
        %vm616 = vweird.f32 %v609
        %vm617 = vmor %vm615, %vm616
        %v618 = vsel %vm617, %v609, %v614
        %v619 = vrsqrt.pop %v513
        %v620 = vmul.f32 %v619, %v513
        %v621 = vmul.f32 %v620, %v619
        %v622 = vmul.f32 0.5, %v621
        %v623 = vsub.f32 1.5, %v622
        %v624 = vmul.f32 %v619, %v623
        %vm625 = vweird.f32 %v513
        %vm626 = vweird.f32 %v619
        %vm627 = vmor %vm625, %vm626
        %v628 = vsel %vm627, %v619, %v624
        %v629 = vrsqrt.pop %v514
        %v630 = vmul.f32 %v629, %v514
        %v631 = vmul.f32 %v630, %v629
        %v632 = vmul.f32 0.5, %v631
        %v633 = vsub.f32 1.5, %v632
        %v634 = vmul.f32 %v629, %v633
        %vm635 = vweird.f32 %v514
        %vm636 = vweird.f32 %v629
        %vm637 = vmor %vm635, %vm636
        %v638 = vsel %vm637, %v629, %v634
        %v639 = vrsqrt.pop %v515
        %v640 = vmul.f32 %v639, %v515
        %v641 = vmul.f32 %v640, %v639
        %v642 = vmul.f32 0.5, %v641
        %v643 = vsub.f32 1.5, %v642
        %v644 = vmul.f32 %v639, %v643
        %vm645 = vweird.f32 %v515
        %vm646 = vweird.f32 %v639
        %vm647 = vmor %vm645, %vm646
        %v648 = vsel %vm647, %v639, %v644
        %v649 = vrsqrt.pop %v516
        %v650 = vmul.f32 %v649, %v516
        %v651 = vmul.f32 %v650, %v649
        %v652 = vmul.f32 0.5, %v651
        %v653 = vsub.f32 1.5, %v652
        %v654 = vmul.f32 %v649, %v653
        %vm655 = vweird.f32 %v516
        %vm656 = vweird.f32 %v649
        %vm657 = vmor %vm655, %vm656
        %v658 = vsel %vm657, %v649, %v654
        %v659 = vrsqrt.pop %v517
        %v660 = vmul.f32 %v659, %v517
        %v661 = vmul.f32 %v660, %v659
        %v662 = vmul.f32 0.5, %v661
        %v663 = vsub.f32 1.5, %v662
        %v664 = vmul.f32 %v659, %v663
        %vm665 = vweird.f32 %v517
        %vm666 = vweird.f32 %v659
        %vm667 = vmor %vm665, %vm666
        %v668 = vsel %vm667, %v659, %v664
        %v669 = vrsqrt.pop %v518
        %v670 = vmul.f32 %v669, %v518
        %v671 = vmul.f32 %v670, %v669
        %v672 = vmul.f32 0.5, %v671
        %v673 = vsub.f32 1.5, %v672
        %v674 = vmul.f32 %v669, %v673
        %vm675 = vweird.f32 %v518
        %vm676 = vweird.f32 %v669
        %vm677 = vmor %vm675, %vm676
        %v678 = vsel %vm677, %v669, %v674
        %v679 = vmul.f32 %v423, %v528
        %v680 = vmul.f32 %v424, %v538
        %v681 = vmul.f32 %v425, %v548
        %v682 = vmul.f32 %v426, %v558
        %v683 = vmul.f32 %v427, %v568
        %v684 = vmul.f32 %v428, %v578
        %v685 = vmul.f32 %v429, %v588
        %v686 = vmul.f32 %v430, %v598
        %v687 = vmul.f32 %v431, %v608
        %v688 = vmul.f32 %v432, %v618
        %v689 = vmul.f32 %v433, %v628
        %v690 = vmul.f32 %v434, %v638
        %v691 = vmul.f32 %v435, %v648
        %v692 = vmul.f32 %v436, %v658
        %v693 = vmul.f32 %v437, %v668
        %v694 = vmul.f32 %v438, %v678
        %v695 = vld [vmem:[#allocation5] sm:$0x1]
        %v697 = vperm.slane %v695, 0
        %v699 = vmul.f32 %v679, %v697
        %v700 = vmul.f32 %v680, %v697
        %v701 = vmul.f32 %v681, %v697
        %v702 = vmul.f32 %v682, %v697
        %v703 = vmul.f32 %v683, %v697
        %v704 = vmul.f32 %v684, %v697
        %v705 = vmul.f32 %v685, %v697
        %v706 = vmul.f32 %v686, %v697
        %v707 = vmul.f32 %v687, %v697
        %v708 = vmul.f32 %v688, %v697
        %v709 = vmul.f32 %v689, %v697
        %v710 = vmul.f32 %v690, %v697
        %v711 = vmul.f32 %v691, %v697
        %v712 = vmul.f32 %v692, %v697
        %v713 = vmul.f32 %v693, %v697
        %v714 = vmul.f32 %v694, %v697
        %v715 = vld [vmem:[#allocation7] sm:$0x1]
        %v717 = vperm.slane %v715, 0
        %v719 = vadd.f32 %v699, %v717
        %v720 = vadd.f32 %v700, %v717
        %v721 = vadd.f32 %v701, %v717
        %v722 = vadd.f32 %v702, %v717
        %v723 = vadd.f32 %v703, %v717
        %v724 = vadd.f32 %v704, %v717
        %v725 = vadd.f32 %v705, %v717
        %v726 = vadd.f32 %v706, %v717
        %v727 = vadd.f32 %v707, %v717
        %v728 = vadd.f32 %v708, %v717
        %v729 = vadd.f32 %v709, %v717
        %v730 = vadd.f32 %v710, %v717
        %v731 = vadd.f32 %v711, %v717
        %v732 = vadd.f32 %v712, %v717
        %v733 = vadd.f32 %v713, %v717
        %v734 = vadd.f32 %v714, %v717
        %v735 = vpack.c.bf16 %v720, %v719
        %v736 = vpack.c.bf16 %v722, %v721
        %v737 = vpack.c.bf16 %v724, %v723
        %v738 = vpack.c.bf16 %v726, %v725
        %v739 = vpack.c.bf16 %v728, %v727
        %v740 = vpack.c.bf16 %v730, %v729
        %v741 = vpack.c.bf16 %v732, %v731
        %v742 = vpack.c.bf16 %v734, %v733
        %v743 = vld [vmem:[#allocation8] sm:$0xff]
        %v744 = vld [vmem:[#allocation8 + $0x8] sm:$0xf]
        %v745 = vld [vmem:[#allocation8 + $0xc] sm:$0xff]
        %v746 = vld [vmem:[#allocation8 + $0x14] sm:$0xf]
        %v747 = vld [vmem:[#allocation8 + $0x18] sm:$0xff]
        %v748 = vld [vmem:[#allocation8 + $0x20] sm:$0xf]
        %v749 = vld [vmem:[#allocation8 + $0x24] sm:$0xff]
        %v750 = vld [vmem:[#allocation8 + $0x2c] sm:$0xf]
        %v751 = vld [vmem:[#allocation8 + $0x30] sm:$0xff]
        %v752 = vld [vmem:[#allocation8 + $0x38] sm:$0xf]
        %v753 = vld [vmem:[#allocation8 + $0x3c] sm:$0xff]
        %v754 = vld [vmem:[#allocation8 + $0x44] sm:$0xf]
        %v755 = vld [vmem:[#allocation8 + $0x48] sm:$0xff]
        %v756 = vld [vmem:[#allocation8 + $0x50] sm:$0xf]
        %v757 = vld [vmem:[#allocation8 + $0x54] sm:$0xff]
        %v758 = vld [vmem:[#allocation8 + $0x5c] sm:$0xf]
        %v759 = vld [vmem:[#allocation8 + $0x60] sm:$0xff]
        %v760 = vld [vmem:[#allocation8 + $0x68] sm:$0xf]
        %v761 = vld [vmem:[#allocation8 + $0x6c] sm:$0xff]
        %v762 = vld [vmem:[#allocation8 + $0x74] sm:$0xf]
        %v763 = vld [vmem:[#allocation8 + $0x78] sm:$0xff]
        %v764 = vld [vmem:[#allocation8 + $0x80] sm:$0xf]
        %v765 = vld [vmem:[#allocation8 + $0x84] sm:$0xff]
        %v766 = vld [vmem:[#allocation8 + $0x8c] sm:$0xf]
        %v767 = vld [vmem:[#allocation8 + $0x90] sm:$0xff]
        %v768 = vld [vmem:[#allocation8 + $0x98] sm:$0xf]
        %v769 = vld [vmem:[#allocation8 + $0x9c] sm:$0xff]
        %v770 = vld [vmem:[#allocation8 + $0xa4] sm:$0xf]
        %v771 = vld [vmem:[#allocation8 + $0xa8] sm:$0xff]
        %v772 = vld [vmem:[#allocation8 + $0xb0] sm:$0xf]
        %v773 = vld [vmem:[#allocation8 + $0xb4] sm:$0xff]
        %v774 = vld [vmem:[#allocation8 + $0xbc] sm:$0xf]
        %v775 = vld [vmem:[%s332] sm:$0x7]
        %v777 = vperm.slane %v775, 0
        %v778 = vperm.slane %v775, 1
        %v779 = vperm.slane %v775, 2
        %v815 = vunpack.c.l.b16 %v743
        %v816 = vunpack.c.h.b16 %v743
        %v817 = vunpack.c.l.b16 %v744
        %v818 = vunpack.c.l.b16 %v745
        %v819 = vunpack.c.h.b16 %v745
        %v820 = vunpack.c.l.b16 %v746
        %v821 = vunpack.c.l.b16 %v747
        %v822 = vunpack.c.h.b16 %v747
        %v823 = vunpack.c.l.b16 %v748
        %v824 = vunpack.c.l.b16 %v749
        %v825 = vunpack.c.h.b16 %v749
        %v826 = vunpack.c.l.b16 %v750
        %v827 = vunpack.c.l.b16 %v751
        %v828 = vunpack.c.h.b16 %v751
        %v829 = vunpack.c.l.b16 %v752
        %v830 = vunpack.c.l.b16 %v753
        %v831 = vunpack.c.h.b16 %v753
        %v832 = vunpack.c.l.b16 %v754
        %v833 = vunpack.c.l.b16 %v755
        %v834 = vunpack.c.h.b16 %v755
        %v835 = vunpack.c.l.b16 %v756
        %v836 = vunpack.c.l.b16 %v757
        %v837 = vunpack.c.h.b16 %v757
        %v838 = vunpack.c.l.b16 %v758
        %v839 = vunpack.c.l.b16 %v759
        %v840 = vunpack.c.h.b16 %v759
        %v841 = vunpack.c.l.b16 %v760
        %v842 = vunpack.c.l.b16 %v761
        %v843 = vunpack.c.h.b16 %v761
        %v844 = vunpack.c.l.b16 %v762
        %v845 = vunpack.c.l.b16 %v763
        %v846 = vunpack.c.h.b16 %v763
        %v847 = vunpack.c.l.b16 %v764
        %v848 = vunpack.c.l.b16 %v765
        %v849 = vunpack.c.h.b16 %v765
        %v850 = vunpack.c.l.b16 %v766
        %v851 = vunpack.c.l.b16 %v767
        %v852 = vunpack.c.h.b16 %v767
        %v853 = vunpack.c.l.b16 %v768
        %v854 = vunpack.c.l.b16 %v769
        %v855 = vunpack.c.h.b16 %v769
        %v856 = vunpack.c.l.b16 %v770
        %v857 = vunpack.c.l.b16 %v771
        %v858 = vunpack.c.h.b16 %v771
        %v859 = vunpack.c.l.b16 %v772
        %v860 = vunpack.c.l.b16 %v773
        %v861 = vunpack.c.h.b16 %v773
        %v862 = vunpack.c.l.b16 %v774
        %v863 = vpack.c.b16 %v818, %v815
        %v864 = vpack.c.b16 %v819, %v816
        %v865 = vpack.c.b16 %v820, %v817
        %v866 = vpack.c.b16 %v824, %v821
        %v867 = vpack.c.b16 %v825, %v822
        %v868 = vpack.c.b16 %v826, %v823
        %v869 = vpack.c.b16 %v830, %v827
        %v870 = vpack.c.b16 %v831, %v828
        %v871 = vpack.c.b16 %v832, %v829
        %v872 = vpack.c.b16 %v836, %v833
        %v873 = vpack.c.b16 %v837, %v834
        %v874 = vpack.c.b16 %v838, %v835
        %v875 = vpack.c.b16 %v842, %v839
        %v876 = vpack.c.b16 %v843, %v840
        %v877 = vpack.c.b16 %v844, %v841
        %v878 = vpack.c.b16 %v848, %v845
        %v879 = vpack.c.b16 %v849, %v846
        %v880 = vpack.c.b16 %v850, %v847
        %v881 = vpack.c.b16 %v854, %v851
        %v882 = vpack.c.b16 %v855, %v852
        %v883 = vpack.c.b16 %v856, %v853
        %v884 = vpack.c.b16 %v860, %v857
        %v885 = vpack.c.b16 %v861, %v858
        %v886 = vpack.c.b16 %v862, %v859
        %911 = vmatpush.bf16.msra.mxu0 %v884
        %912 = vmatpush.bf16.msra.mxu0 %v881
        %913 = vmatpush.bf16.msra.mxu0 %v878
        %914 = vmatpush.bf16.msra.mxu0 %v875
        %915 = vmatpush.bf16.msra.mxu0 %v872
        %916 = vmatpush.bf16.msra.mxu0 %v869
        %917 = vmatpush.bf16.msra.mxu0 %v866
        %918 = vmatpush.bf16.msra.mxu0 %v863
        %919 = vmatmul.bf16.gmra.mxu0 %v735
        %v920 = vpop.f32.mrf.mxu0
        %v921 = vadd.f32 %v777, %v920
        %v922 = vpop.f32.mrf.mxu0
        %v923 = vadd.f32 %v777, %v922
        %924 = vmatmul.bf16.gmra.mxu0 %v736
        %v925 = vpop.f32.mrf.mxu0
        %v926 = vadd.f32 %v777, %v925
        %v927 = vpop.f32.mrf.mxu0
        %v928 = vadd.f32 %v777, %v927
        %929 = vmatmul.bf16.gmra.mxu0 %v737
        %v930 = vpop.f32.mrf.mxu0
        %v931 = vadd.f32 %v777, %v930
        %v932 = vpop.f32.mrf.mxu0
        %v933 = vadd.f32 %v777, %v932
        %934 = vmatmul.bf16.gmra.mxu0 %v738
        %v935 = vpop.f32.mrf.mxu0
        %v936 = vadd.f32 %v777, %v935
        %v937 = vpop.f32.mrf.mxu0
        %v938 = vadd.f32 %v777, %v937
        %939 = vmatmul.bf16.gmra.mxu0 %v739
        %v940 = vpop.f32.mrf.mxu0
        %v941 = vadd.f32 %v777, %v940
        %v942 = vpop.f32.mrf.mxu0
        %v943 = vadd.f32 %v777, %v942
        %944 = vmatmul.bf16.gmra.mxu0 %v740
        %v945 = vpop.f32.mrf.mxu0
        %v946 = vadd.f32 %v777, %v945
        %v947 = vpop.f32.mrf.mxu0
        %v948 = vadd.f32 %v777, %v947
        %949 = vmatmul.bf16.gmra.mxu0 %v741
        %v950 = vpop.f32.mrf.mxu0
        %v951 = vadd.f32 %v777, %v950
        %v952 = vpop.f32.mrf.mxu0
        %v953 = vadd.f32 %v777, %v952
        %954 = vmatmul.bf16.gmra.mxu0 %v742
        %v955 = vpop.f32.mrf.mxu0
        %v956 = vadd.f32 %v777, %v955
        %v957 = vpop.f32.mrf.mxu0
        %v958 = vadd.f32 %v777, %v957
        %959 = vdwg.mxu0
        %960 = vmatpush.bf16.msra.mxu0 %v885
        %961 = vmatpush.bf16.msra.mxu0 %v882
        %962 = vmatpush.bf16.msra.mxu0 %v879
        %963 = vmatpush.bf16.msra.mxu0 %v876
        %964 = vmatpush.bf16.msra.mxu0 %v873
        %965 = vmatpush.bf16.msra.mxu0 %v870
        %966 = vmatpush.bf16.msra.mxu0 %v867
        %967 = vmatpush.bf16.msra.mxu0 %v864
        %968 = vmatmul.bf16.gmra.mxu0 %v735
        %v969 = vpop.f32.mrf.mxu0
        %v970 = vadd.f32 %v778, %v969
        %v971 = vpop.f32.mrf.mxu0
        %v972 = vadd.f32 %v778, %v971
        %973 = vmatmul.bf16.gmra.mxu0 %v736
        %v974 = vpop.f32.mrf.mxu0
        %v975 = vadd.f32 %v778, %v974
        %v976 = vpop.f32.mrf.mxu0
        %v977 = vadd.f32 %v778, %v976
        %978 = vmatmul.bf16.gmra.mxu0 %v737
        %v979 = vpop.f32.mrf.mxu0
        %v980 = vadd.f32 %v778, %v979
        %v981 = vpop.f32.mrf.mxu0
        %v982 = vadd.f32 %v778, %v981
        %983 = vmatmul.bf16.gmra.mxu0 %v738
        %v984 = vpop.f32.mrf.mxu0
        %v985 = vadd.f32 %v778, %v984
        %v986 = vpop.f32.mrf.mxu0
        %v987 = vadd.f32 %v778, %v986
        %988 = vmatmul.bf16.gmra.mxu0 %v739
        %v989 = vpop.f32.mrf.mxu0
        %v990 = vadd.f32 %v778, %v989
        %v991 = vpop.f32.mrf.mxu0
        %v992 = vadd.f32 %v778, %v991
        %993 = vmatmul.bf16.gmra.mxu0 %v740
        %v994 = vpop.f32.mrf.mxu0
        %v995 = vadd.f32 %v778, %v994
        %v996 = vpop.f32.mrf.mxu0
        %v997 = vadd.f32 %v778, %v996
        %998 = vmatmul.bf16.gmra.mxu0 %v741
        %v999 = vpop.f32.mrf.mxu0
        %v1000 = vadd.f32 %v778, %v999
        %v1001 = vpop.f32.mrf.mxu0
        %v1002 = vadd.f32 %v778, %v1001
        %1003 = vmatmul.bf16.gmra.mxu0 %v742
        %v1004 = vpop.f32.mrf.mxu0
        %v1005 = vadd.f32 %v778, %v1004
        %v1006 = vpop.f32.mrf.mxu0
        %v1007 = vadd.f32 %v778, %v1006
        %1008 = vdwg.mxu0
        %1009 = vmatpush.bf16.msra.mxu0 %v886
        %1010 = vmatpush.bf16.msra.mxu0 %v883
        %1011 = vmatpush.bf16.msra.mxu0 %v880
        %1012 = vmatpush.bf16.msra.mxu0 %v877
        %1013 = vmatpush.bf16.msra.mxu0 %v874
        %1014 = vmatpush.bf16.msra.mxu0 %v871
        %1015 = vmatpush.bf16.msra.mxu0 %v868
        %1016 = vmatpush.bf16.msra.mxu0 %v865
        %1017 = vmatmul.bf16.gmra.mxu0 %v735
        %v1018 = vpop.f32.mrf.mxu0
        %v1019 = vadd.f32 %v779, %v1018
        %v1020 = vpop.f32.mrf.mxu0
        %v1021 = vadd.f32 %v779, %v1020
        %1022 = vmatmul.bf16.gmra.mxu0 %v736
        %v1023 = vpop.f32.mrf.mxu0
        %v1024 = vadd.f32 %v779, %v1023
        %v1025 = vpop.f32.mrf.mxu0
        %v1026 = vadd.f32 %v779, %v1025
        %1027 = vmatmul.bf16.gmra.mxu0 %v737
        %v1028 = vpop.f32.mrf.mxu0
        %v1029 = vadd.f32 %v779, %v1028
        %v1030 = vpop.f32.mrf.mxu0
        %v1031 = vadd.f32 %v779, %v1030
        %1032 = vmatmul.bf16.gmra.mxu0 %v738
        %v1033 = vpop.f32.mrf.mxu0
        %v1034 = vadd.f32 %v779, %v1033
        %v1035 = vpop.f32.mrf.mxu0
        %v1036 = vadd.f32 %v779, %v1035
        %1037 = vmatmul.bf16.gmra.mxu0 %v739
        %v1038 = vpop.f32.mrf.mxu0
        %v1039 = vadd.f32 %v779, %v1038
        %v1040 = vpop.f32.mrf.mxu0
        %v1041 = vadd.f32 %v779, %v1040
        %1042 = vmatmul.bf16.gmra.mxu0 %v740
        %v1043 = vpop.f32.mrf.mxu0
        %v1044 = vadd.f32 %v779, %v1043
        %v1045 = vpop.f32.mrf.mxu0
        %v1046 = vadd.f32 %v779, %v1045
        %1047 = vmatmul.bf16.gmra.mxu0 %v741
        %v1048 = vpop.f32.mrf.mxu0
        %v1049 = vadd.f32 %v779, %v1048
        %v1050 = vpop.f32.mrf.mxu0
        %v1051 = vadd.f32 %v779, %v1050
        %1052 = vmatmul.bf16.gmra.mxu0 %v742
        %v1053 = vpop.f32.mrf.mxu0
        %v1054 = vadd.f32 %v779, %v1053
        %v1055 = vpop.f32.mrf.mxu0
        %v1056 = vadd.f32 %v779, %v1055
        %1057 = vdwg.mxu0
        %v1058 = vpack.c.bf16 %v970, %v921
        %v1059 = vpack.c.bf16 %v1019, %v1019
        %v1060 = vpack.c.bf16 %v972, %v923
        %v1061 = vpack.c.bf16 %v1021, %v1021
        %v1062 = vpack.c.bf16 %v975, %v926
        %v1063 = vpack.c.bf16 %v1024, %v1024
        %v1064 = vpack.c.bf16 %v977, %v928
        %v1065 = vpack.c.bf16 %v1026, %v1026
        %v1066 = vpack.c.bf16 %v980, %v931
        %v1067 = vpack.c.bf16 %v1029, %v1029
        %v1068 = vpack.c.bf16 %v982, %v933
        %v1069 = vpack.c.bf16 %v1031, %v1031
        %v1070 = vpack.c.bf16 %v985, %v936
        %v1071 = vpack.c.bf16 %v1034, %v1034
        %v1072 = vpack.c.bf16 %v987, %v938
        %v1073 = vpack.c.bf16 %v1036, %v1036
        %v1074 = vpack.c.bf16 %v990, %v941
        %v1075 = vpack.c.bf16 %v1039, %v1039
        %v1076 = vpack.c.bf16 %v992, %v943
        %v1077 = vpack.c.bf16 %v1041, %v1041
        %v1078 = vpack.c.bf16 %v995, %v946
        %v1079 = vpack.c.bf16 %v1044, %v1044
        %v1080 = vpack.c.bf16 %v997, %v948
        %v1081 = vpack.c.bf16 %v1046, %v1046
        %v1082 = vpack.c.bf16 %v1000, %v951
        %v1083 = vpack.c.bf16 %v1049, %v1049
        %v1084 = vpack.c.bf16 %v1002, %v953
        %v1085 = vpack.c.bf16 %v1051, %v1051
        %v1086 = vpack.c.bf16 %v1005, %v956
        %v1087 = vpack.c.bf16 %v1054, %v1054
        %v1088 = vpack.c.bf16 %v1007, %v958
        %v1089 = vpack.c.bf16 %v1056, %v1056
        %1090 = vst [vmem:[%s326] sm:$0xff] %v1058
        %1091 = vst [vmem:[%s326 + $0x8] sm:$0xf] %v1059
        %1092 = vst [vmem:[%s326 + $0xc] sm:$0xff] %v1060
        %1093 = vst [vmem:[%s326 + $0x14] sm:$0xf] %v1061
        %1094 = vst [vmem:[%s326 + $0x18] sm:$0xff] %v1062
        %1095 = vst [vmem:[%s326 + $0x20] sm:$0xf] %v1063
        %1096 = vst [vmem:[%s326 + $0x24] sm:$0xff] %v1064
        %1097 = vst [vmem:[%s326 + $0x2c] sm:$0xf] %v1065
        %1098 = vst [vmem:[%s326 + $0x30] sm:$0xff] %v1066
        %1099 = vst [vmem:[%s326 + $0x38] sm:$0xf] %v1067
        %1100 = vst [vmem:[%s326 + $0x3c] sm:$0xff] %v1068
        %1101 = vst [vmem:[%s326 + $0x44] sm:$0xf] %v1069
        %1102 = vst [vmem:[%s326 + $0x48] sm:$0xff] %v1070
        %1103 = vst [vmem:[%s326 + $0x50] sm:$0xf] %v1071
        %1104 = vst [vmem:[%s326 + $0x54] sm:$0xff] %v1072
        %1105 = vst [vmem:[%s326 + $0x5c] sm:$0xf] %v1073
        %1106 = vst [vmem:[%s326 + $0x60] sm:$0xff] %v1074
        %1107 = vst [vmem:[%s326 + $0x68] sm:$0xf] %v1075
        %1108 = vst [vmem:[%s326 + $0x6c] sm:$0xff] %v1076
        %1109 = vst [vmem:[%s326 + $0x74] sm:$0xf] %v1077
        %1110 = vst [vmem:[%s326 + $0x78] sm:$0xff] %v1078
        %1111 = vst [vmem:[%s326 + $0x80] sm:$0xf] %v1079
        %1112 = vst [vmem:[%s326 + $0x84] sm:$0xff] %v1080
        %1113 = vst [vmem:[%s326 + $0x8c] sm:$0xf] %v1081
        %1114 = vst [vmem:[%s326 + $0x90] sm:$0xff] %v1082
        %1115 = vst [vmem:[%s326 + $0x98] sm:$0xf] %v1083
        %1116 = vst [vmem:[%s326 + $0x9c] sm:$0xff] %v1084
        %1117 = vst [vmem:[%s326 + $0xa4] sm:$0xf] %v1085
        %1118 = vst [vmem:[%s326 + $0xa8] sm:$0xff] %v1086
        %1119 = vst [vmem:[%s326 + $0xb0] sm:$0xf] %v1087
        %1120 = vst [vmem:[%s326 + $0xb4] sm:$0xff] %v1088
        %1121 = vst [vmem:[%s326 + $0xbc] sm:$0xf] %v1089
        %s1122 = sand.u32 %s166, 1
        %s1123 = scalar_lea.sflag [#allocation4], %s1122
        %s1124 = sand.u32 %s166, 1
        %s1125 = smul.addr %s1124, 192
        %s1126 = scalar_lea.vmem [#allocation10], %s1125
        // Predicated region
        $region57: #{tpu_custom_call.1} parent=39 // pred_check
          %p1127 = pneg %p176
        $region58: #{tpu_custom_call.1} parent=39 // pred_check_branch
          %1129 = sbr.rel (%p1127) target = $region60
        $region59: #{tpu_custom_call.1} parent=39 // pred_region
          %s1130 = smul.u32 16, %s28
          %s1131 = smul.u32 3, %s29
          %1133 = vsyncadd %s1123, 0
          %s1134 = smul.addr %s1130, 3
          %s1135 = sadd.s32 %s1131, %s1134
          %s1136 = smul.addr %s1135, 4
          %s1137 = scalar_lea.hbm %s5, %s1136
          %s1138 = sshll.u32 %s1126, 4
          %s1139 = int_to_ptr.vmem [resolvable:$true] %s1138
          %s1140 = sshll.u32 %s1137, 4
          %s1141 = int_to_ptr.hbm [resolvable:$true] %s1140
          %1146 = dma.vmem_to_hbm [thread:$0]  %s1139, 3072, %s1141, %s1123, 192, 192, 12
        $region60: #{tpu_custom_call.1} parent=39 // pred_fallthru
          _
      $region40: #{tpu_custom_call.1} parent=5 // pred_fallthru
        _
      %p1147 = scmp.le.s32.totalorder 2, %s19
      // Predicated region
      $region61: #{tpu_custom_call.1} parent=5 // pred_check
        %p1148 = pneg %p1147
      $region62: #{tpu_custom_call.1} parent=5 // pred_check_branch
        %1150 = sbr.rel (%p1148) target = $region64
      $region63: #{tpu_custom_call.1} parent=5 // pred_region
        %s1151 = ssub.s32 %s19, 2
        // Predicated region
        $region65: #{tpu_custom_call.1} parent=63 // pred_check
          %p1152 = pneg %p182
        $region66: #{tpu_custom_call.1} parent=63 // pred_check_branch
          %1154 = sbr.rel (%p1152) target = $region68
        $region67: #{tpu_custom_call.1} parent=63 // pred_region
          %s1155 = sand.u32 %s167, 1
          %s1156 = scalar_lea.sflag [#allocation4], %s1155
          %s1157 = sand.u32 %s167, 1
          %s1158 = smul.addr %s1157, 192
          %s1159 = scalar_lea.vmem [#allocation10], %s1158
          %1161 = dma.done %s1156, 3072
        $region68: #{tpu_custom_call.1} parent=63 // pred_fallthru
          _
      $region64: #{tpu_custom_call.1} parent=5 // pred_fallthru
        _
    $region6: #{tpu_custom_call.1} parent=1 // loop_footer
      %s23 = sadd.s32 1, %s19
    $region7: #{tpu_custom_call.1} parent=1 // loop_footer_branch
      %18 = sbr.rel target = $region3
    $region8: #{tpu_custom_call.1} parent=1 // loop_exit
      _
    %1162 = vsyncpa [#allocation3], 1
    %s1163 = scalar_lea.sflag [#allocation3], 1
    %1164 = vsyncpa %s1163, 1
    %1165 = vsyncpa [#allocation6], 1
    %1166 = vsyncpa [#allocation9], 1
    %1167 = vsyncpa [#allocation4], 1
    %s1168 = scalar_lea.sflag [#allocation4], 1
    %1169 = vsyncpa %s1168, 1

</llo_original>
